<compile_context>
chip_gen: v7x
topology: tpu7x:2x2x1
jax: 0.10.0
libtpu: 0.0.40
codegen_flags: <defaults>
</compile_context>

<pallas_src>
import functools

import jax
import jax.numpy as jnp
from jax.experimental import pallas as pl
from jax.experimental.pallas import tpu as pltpu


_LANES = 128      # vreg lane width: batch (lane) tiles must be multiples of this
_SUBLANES = 8


def _round_up(n, m):
    return ((n + m - 1) // m) * m


# ----------------------------- Pallas kernel --------------------------------

def _fused_mlp_kernel(*refs, num_layers):
    """Fused MLP on a transposed (feature-on-sublane, batch-on-lane) layout.

    refs layout: x_ref, (w_ref, b_ref) * num_layers, out_ref
      x_ref  : (d_in,  tile_B)  -- batch on the lane (last) dim
      w_ref  : (n_out, n_in)    -- PyTorch orientation, used as y = W @ y
      b_ref  : (n_out, 1)       -- broadcasts along lanes
      out_ref: (d_out, tile_B)
    means/stds are pre-folded into the last (W, b) by the wrapper.
    """
    x_ref = refs[0]
    o_ref = refs[1 + 2 * num_layers]

    y = x_ref[...]
    for i in range(num_layers):
        w = refs[1 + 2 * i][...]
        b = refs[2 + 2 * i][...]
        y = jnp.dot(w, y, preferred_element_type=jnp.float32) + b
        if i < num_layers - 1:
            y = jnp.maximum(y, 0.0)
    o_ref[...] = y.astype(o_ref.dtype)


# ------------------------------ JAX wrapper ----------------------------------

def nn_module_forward(x, params, output_means, output_stds, *,
                      batch_tile=8192, compute_dtype=jnp.float32,
                      force_pallas=False):
    """Forward pass of nnModule as a single fused Pallas kernel.

    params: list of (W, b) with W of shape (out_features, in_features) — PyTorch
    orientation — and b of shape (out_features, 1).
    """
    if x.ndim == 1:
        x = jnp.reshape(x, (1, -1))

    B, d_in = x.shape
    num_layers = len(params)
    d_out = params[-1][0].shape[0]

    # Fold the per-column output affine into the last layer (zero-cost algebra):
    #   out = means + stds * (W_L y + b_L)  ==  (stds*W_L) y + (stds*b_L + means)
    w_last, b_last = params[-1]
    stds_c = output_stds.reshape(-1, 1).astype(jnp.float32)
    means_c = output_means.reshape(-1, 1).astype(jnp.float32)
    folded = list(params[:-1]) + [(w_last.astype(jnp.float32) * stds_c,
                                   b_last.astype(jnp.float32) * stds_c + means_c)]

    # Tiny batches: pallas_call launch overhead dominates -> plain XLA path.
    if B <= _SUBLANES and not force_pallas:
        y = x.astype(jnp.float32)
        for i, (w, b) in enumerate(folded):
            y = y @ w.T + b.T
            if i < num_layers - 1:
                y = jnp.maximum(y, 0.0)
        return y

    # --- Tile selection: batch lives on the lane dim (multiples of 128). ---
    n_tiles = max(1, pl.cdiv(B, batch_tile))
    if B >= 2 * _SUBLANES * _LANES:
        # Large batch: guarantee >= 2 tiles so the "parallel" axis can shard
        # across v7x's two TensorCores.
        n_tiles = max(n_tiles, 2)
    tile = _round_up(pl.cdiv(B, n_tiles), _LANES)
    b_pad = n_tiles * tile

    # Transposed, lane-dense layout: x^T is (d_in, b_pad). Padded columns are
    # computed on and discarded (harmless: nothing reduces over the batch dim).
    xt = x.astype(compute_dtype).T
    if b_pad != B:
        xt = jnp.pad(xt, ((0, 0), (0, b_pad - B)))

    flat_args = [xt]
    in_specs = [pl.BlockSpec((d_in, tile), lambda i: (0, i))]
    for (w, b) in folded:
        w = w.astype(compute_dtype)
        b32 = b.astype(jnp.float32)
        flat_args += [w, b32]
        # Full-block, grid-invariant index_map -> weights/biases stay VMEM resident.
        in_specs += [pl.BlockSpec(w.shape, lambda i: (0, 0)),
                     pl.BlockSpec(b32.shape, lambda i: (0, 0))]

    # Rough double-buffered VMEM footprint; only raise the scoped limit if a
    # user-chosen huge tile would exceed v5e's 16 MiB default.
    widest = max([d_in, d_out] + [w.shape[0] for (w, _) in folded])
    itemsize = jnp.dtype(compute_dtype).itemsize
    step_bytes = tile * (2 * itemsize * (d_in + d_out) + 2 * 4 * widest)
    vmem_limit = None
    if step_bytes > (12 << 20):
        vmem_limit = min(_round_up(2 * step_bytes, 1 << 20), 48 << 20)

    out_t = pl.pallas_call(
        functools.partial(_fused_mlp_kernel, num_layers=num_layers),
        out_shape=jax.ShapeDtypeStruct((d_out, b_pad), jnp.float32),
        grid=(n_tiles,),
        in_specs=in_specs,
        out_specs=pl.BlockSpec((d_out, tile), lambda i: (0, i)),
        compiler_params=pltpu.CompilerParams(
            dimension_semantics=("parallel",),
            vmem_limit_bytes=vmem_limit),
    )(*flat_args)

    return out_t[:, :B].T


def init_params(nNodes, key):
    """Deterministic init mimicking torch.nn.Linear default (U[-1/sqrt(in), 1/sqrt(in)]).

    Weights are stored in PyTorch (out_features, in_features) orientation; biases as
    (out_features, 1) columns so they broadcast over the lane (batch) dim in-kernel.
    """
    params = []
    for i in range(len(nNodes) - 1):
        fan_in, fan_out = nNodes[i], nNodes[i + 1]
        key, kw, kb = jax.random.split(key, 3)
        bound = 1.0 / jnp.sqrt(jnp.float32(fan_in))
        w = jax.random.uniform(kw, (fan_out, fan_in), jnp.float32, -bound, bound)
        b = jax.random.uniform(kb, (fan_out, 1), jnp.float32, -bound, bound)
        params.append((w, b))
    return params


def _reference_forward(x, params, output_means, output_stds):
    if x.ndim == 1:
        x = jnp.reshape(x, (1, -1))
    y = x.astype(jnp.float32)
    for (w, b) in params[:-1]:
        y = jnp.maximum(y @ w.T + b.T, 0.0)
    w, b = params[-1]
    y = y @ w.T + b.T
    return output_means[None, :] + output_stds[None, :] * y


# --------------------------------- main --------------------------------------

if __name__ == "__main__":
    nNodes = [16, 32, 32, 8]   # small MLP: 3 Linear layers

    key = jax.random.PRNGKey(0)
    key, kx, kx2, km, ks = jax.random.split(key, 5)

    params = init_params(nNodes, key)

    # module defaults are means=zeros, stds=ones; use non-trivial values to
    # exercise the folded affine path deterministically.
    output_means = jax.random.normal(km, (nNodes[-1],), jnp.float32)
    output_stds = jnp.abs(jax.random.normal(ks, (nNodes[-1],), jnp.float32)) + 0.5

    # 1) Batch not a multiple of 128 -> exercises lane padding; single fused kernel.
    x = jax.random.normal(kx, (300, nNodes[0]), jnp.float32)
    out = jax.block_until_ready(nn_module_forward(x, params, output_means, output_stds))
    ref = _reference_forward(x, params, output_means, output_stds)
    assert out.shape == (300, nNodes[-1])
    assert jnp.allclose(out, ref, atol=1e-4, rtol=1e-4)

    # 2) Small batch forced through the Pallas path (grid=(1,), tile=128).
    xs = jax.random.normal(kx2, (4, nNodes[0]), jnp.float32)
    outs = jax.block_until_ready(
        nn_module_forward(xs, params, output_means, output_stds, force_pallas=True))
    refs_small = _reference_forward(xs, params, output_means, output_stds)
    assert outs.shape == (4, nNodes[-1])
    assert jnp.allclose(outs, refs_small, atol=1e-4, rtol=1e-4)

    # 3) 1D input path (reshaped to (1, -1) like the PyTorch module; tiny-batch
    #    fallback to plain XLA).
    x1 = jax.random.normal(key, (nNodes[0],), jnp.float32)
    out1 = jax.block_until_ready(nn_module_forward(x1, params, output_means, output_stds))
    ref1 = _reference_forward(x1, params, output_means, output_stds)
    assert out1.shape == (1, nNodes[-1])
    assert jnp.allclose(out1, ref1, atol=1e-4, rtol=1e-4)

    print("KERNEL_OK")
</pallas_src>

<mosaic_0001>
module attributes {stable_mosaic.version = 11 : i64} {
  func.func @_fused_mlp_kernel(%arg0: i32, %arg1: memref<16x384xf32, #tpu.memory_space<vmem>>, %arg2: memref<32x16xf32, #tpu.memory_space<vmem>>, %arg3: memref<32x1xf32, #tpu.memory_space<vmem>>, %arg4: memref<32x32xf32, #tpu.memory_space<vmem>>, %arg5: memref<32x1xf32, #tpu.memory_space<vmem>>, %arg6: memref<8x32xf32, #tpu.memory_space<vmem>>, %arg7: memref<8x1xf32, #tpu.memory_space<vmem>>, %arg8: memref<8x384xf32, #tpu.memory_space<vmem>>) attributes {dimension_semantics = [#tpu.dimension_semantics<parallel>], iteration_bounds = array<i64: 1>, scalar_prefetch = 0 : i64, scratch_operands = 0 : i64, tpu.core_type = #tpu.core_type<tc>, window_params = [{transform_indices = @transform_0, window_bounds = array<i64: 16, 384>}, {pipeline_mode = #tpu.pipeline_mode<synchronous>, transform_indices = @transform_1, window_bounds = array<i64: 32, 16>}, {pipeline_mode = #tpu.pipeline_mode<synchronous>, transform_indices = @transform_2, window_bounds = array<i64: 32, 1>}, {pipeline_mode = #tpu.pipeline_mode<synchronous>, transform_indices = @transform_3, window_bounds = array<i64: 32, 32>}, {pipeline_mode = #tpu.pipeline_mode<synchronous>, transform_indices = @transform_4, window_bounds = array<i64: 32, 1>}, {pipeline_mode = #tpu.pipeline_mode<synchronous>, transform_indices = @transform_5, window_bounds = array<i64: 8, 32>}, {pipeline_mode = #tpu.pipeline_mode<synchronous>, transform_indices = @transform_6, window_bounds = array<i64: 8, 1>}, {transform_indices = @transform_7, window_bounds = array<i64: 8, 384>}]} {
    %c0 = arith.constant 0 : index
    %c0_0 = arith.constant 0 : index
    %0 = vector.load %arg1[%c0, %c0_0] : memref<16x384xf32, #tpu.memory_space<vmem>>, vector<16x384xf32>
    %c0_1 = arith.constant 0 : index
    %c0_2 = arith.constant 0 : index
    %1 = vector.load %arg2[%c0_1, %c0_2] : memref<32x16xf32, #tpu.memory_space<vmem>>, vector<32x16xf32>
    %c0_3 = arith.constant 0 : index
    %c0_4 = arith.constant 0 : index
    %2 = vector.load %arg3[%c0_3, %c0_4] : memref<32x1xf32, #tpu.memory_space<vmem>>, vector<32x1xf32>
    %cst = arith.constant dense<0.000000e+00> : vector<32x384xf32>
    %3 = tpu.matmul %1, %0, %cst {dimension_numbers = #tpu.dot_dimension_numbers<[1], [0], [0], [1], [0, 0, 1, 1], [], []>} : vector<32x16xf32>, vector<16x384xf32>, vector<32x384xf32> -> vector<32x384xf32>
    %4 = vector.broadcast %2 : vector<32x1xf32> to vector<32x384xf32>
    %5 = arith.addf %3, %4 : vector<32x384xf32>
    %cst_5 = arith.constant 0.000000e+00 : f32
    %6 = vector.broadcast %cst_5 : f32 to vector<32x384xf32>
    %7 = arith.maximumf %5, %6 : vector<32x384xf32>
    %c0_6 = arith.constant 0 : index
    %c0_7 = arith.constant 0 : index
    %8 = vector.load %arg4[%c0_6, %c0_7] : memref<32x32xf32, #tpu.memory_space<vmem>>, vector<32x32xf32>
    %c0_8 = arith.constant 0 : index
    %c0_9 = arith.constant 0 : index
    %9 = vector.load %arg5[%c0_8, %c0_9] : memref<32x1xf32, #tpu.memory_space<vmem>>, vector<32x1xf32>
    %cst_10 = arith.constant dense<0.000000e+00> : vector<32x384xf32>
    %10 = tpu.matmul %8, %7, %cst_10 {dimension_numbers = #tpu.dot_dimension_numbers<[1], [0], [0], [1], [0, 0, 1, 1], [], []>} : vector<32x32xf32>, vector<32x384xf32>, vector<32x384xf32> -> vector<32x384xf32>
    %11 = vector.broadcast %9 : vector<32x1xf32> to vector<32x384xf32>
    %12 = arith.addf %10, %11 : vector<32x384xf32>
    %cst_11 = arith.constant 0.000000e+00 : f32
    %13 = vector.broadcast %cst_11 : f32 to vector<32x384xf32>
    %14 = arith.maximumf %12, %13 : vector<32x384xf32>
    %c0_12 = arith.constant 0 : index
    %c0_13 = arith.constant 0 : index
    %15 = vector.load %arg6[%c0_12, %c0_13] : memref<8x32xf32, #tpu.memory_space<vmem>>, vector<8x32xf32>
    %c0_14 = arith.constant 0 : index
    %c0_15 = arith.constant 0 : index
    %16 = vector.load %arg7[%c0_14, %c0_15] : memref<8x1xf32, #tpu.memory_space<vmem>>, vector<8x1xf32>
    %cst_16 = arith.constant dense<0.000000e+00> : vector<8x384xf32>
    %17 = tpu.matmul %15, %14, %cst_16 {dimension_numbers = #tpu.dot_dimension_numbers<[1], [0], [0], [1], [0, 0, 1, 1], [], []>} : vector<8x32xf32>, vector<32x384xf32>, vector<8x384xf32> -> vector<8x384xf32>
    %18 = vector.broadcast %16 : vector<8x1xf32> to vector<8x384xf32>
    %19 = arith.addf %17, %18 : vector<8x384xf32>
    %c0_17 = arith.constant 0 : index
    %c0_18 = arith.constant 0 : index
    %20 = vector.load %arg8[%c0_17, %c0_18] : memref<8x384xf32, #tpu.memory_space<vmem>>, vector<8x384xf32>
    tpu.vector_store %arg8[%c0_17, %c0_18], %19 {strides = array<i32>} : memref<8x384xf32, #tpu.memory_space<vmem>>, vector<8x384xf32>,
    return
  }
  func.func @transform_0(%arg0: i32) -> (i32, i32) {
    %c0_i32 = arith.constant 0 : i32
    %c0_i32_0 = arith.constant 0 : i32
    return %c0_i32, %arg0 : i32, i32
  }
  func.func @transform_1(%arg0: i32) -> (i32, i32) {
    %c0_i32 = arith.constant 0 : i32
    %c0_i32_0 = arith.constant 0 : i32
    %c0_i32_1 = arith.constant 0 : i32
    return %c0_i32, %c0_i32_0 : i32, i32
  }
  func.func @transform_2(%arg0: i32) -> (i32, i32) {
    %c0_i32 = arith.constant 0 : i32
    %c0_i32_0 = arith.constant 0 : i32
    %c0_i32_1 = arith.constant 0 : i32
    return %c0_i32, %c0_i32_0 : i32, i32
  }
  func.func @transform_3(%arg0: i32) -> (i32, i32) {
    %c0_i32 = arith.constant 0 : i32
    %c0_i32_0 = arith.constant 0 : i32
    %c0_i32_1 = arith.constant 0 : i32
    return %c0_i32, %c0_i32_0 : i32, i32
  }
  func.func @transform_4(%arg0: i32) -> (i32, i32) {
    %c0_i32 = arith.constant 0 : i32
    %c0_i32_0 = arith.constant 0 : i32
    %c0_i32_1 = arith.constant 0 : i32
    return %c0_i32, %c0_i32_0 : i32, i32
  }
  func.func @transform_5(%arg0: i32) -> (i32, i32) {
    %c0_i32 = arith.constant 0 : i32
    %c0_i32_0 = arith.constant 0 : i32
    %c0_i32_1 = arith.constant 0 : i32
    return %c0_i32, %c0_i32_0 : i32, i32
  }
  func.func @transform_6(%arg0: i32) -> (i32, i32) {
    %c0_i32 = arith.constant 0 : i32
    %c0_i32_0 = arith.constant 0 : i32
    %c0_i32_1 = arith.constant 0 : i32
    return %c0_i32, %c0_i32_0 : i32, i32
  }
  func.func @transform_7(%arg0: i32) -> (i32, i32) {
    %c0_i32 = arith.constant 0 : i32
    %c0_i32_0 = arith.constant 0 : i32
    return %c0_i32, %arg0 : i32, i32
  }
}

</mosaic_0001>

<llo_original>
// kernel: tpu_custom_call.1
$region0: #{tpu_custom_call.1}
  #allocation0 [shape = 'u32[]', space=smem, size = 0x4, offset = 0x4, fixed_abs, tag = 'smem constant byte address 0x4 - core index']
  #allocation1 [shape = 'u32[144,128]{1,0:T(1,128)}', space=vmem, size = 0x12000, scoped, tag = 'internal scratch']
  %s0 = inlined_call_operand.vmem [shape: f32[16,384], index: 0, kind: input, shape index: {}]
  %s1 = inlined_call_operand.vmem [shape: f32[32,16], index: 1, kind: input, shape index: {}]
  %s2 = inlined_call_operand.vmem [shape: f32[32,1], index: 2, kind: input, shape index: {}]
  %s3 = inlined_call_operand.vmem [shape: f32[32,32], index: 3, kind: input, shape index: {}]
  %s4 = inlined_call_operand.vmem [shape: f32[32,1], index: 4, kind: input, shape index: {}]
  %s5 = inlined_call_operand.vmem [shape: f32[8,32], index: 5, kind: input, shape index: {}]
  %s6 = inlined_call_operand.vmem [shape: f32[8,1], index: 6, kind: input, shape index: {}]
  %s7 = inlined_call_operand.hbm [shape: f32[8,384], index: 7, kind: output, shape index: {}]
  %s8 = sld [smem:[#allocation0]]
  $region38: #{tpu_custom_call.1} parent=0
    _
  %s10 = ssub.s32 1, %s8
  %s11 = scalar_select 0, %s10, %s8
  $region1: #{tpu_custom_call.1} parent=0
    #allocation2 [shape = 'u8[12288]{0}', space=vmem, size = 0x3000, scoped, tag = 'output window, operand 0, single buffered']
    #allocation3 [shape = 's32[1]{0}', space=sflag, size = 0x4, scoped, tag = 'scoped memory for tpu_custom_call.1']
    %12 = vsyncpa [#allocation3], 0
    // Predicated region
    $region2: #{tpu_custom_call.1} parent=1 // pred_check
      _
    $region3: #{tpu_custom_call.1} parent=1 // pred_check_branch
      %14 = sbr.rel (0) target = $region5
    $region4: #{tpu_custom_call.1} parent=1 // pred_region
      _
    $region5: #{tpu_custom_call.1} parent=1 // pred_fallthru
      _
    // Predicated region
    $region6: #{tpu_custom_call.1} parent=1 // pred_check
      _
    $region7: #{tpu_custom_call.1} parent=1 // pred_check_branch
      %16 = sbr.rel (0) target = $region9
    $region8: #{tpu_custom_call.1} parent=1 // pred_region
      _
    $region9: #{tpu_custom_call.1} parent=1 // pred_fallthru
      _
    // Predicated region
    $region10: #{tpu_custom_call.1} parent=1 // pred_check
      _
    $region11: #{tpu_custom_call.1} parent=1 // pred_check_branch
      %18 = sbr.rel (0) target = $region13
    $region12: #{tpu_custom_call.1} parent=1 // pred_region
      _
    $region13: #{tpu_custom_call.1} parent=1 // pred_fallthru
      _
    // Predicated region
    $region14: #{tpu_custom_call.1} parent=1 // pred_check
      _
    $region15: #{tpu_custom_call.1} parent=1 // pred_check_branch
      %20 = sbr.rel (0) target = $region17
    $region16: #{tpu_custom_call.1} parent=1 // pred_region
      _
    $region17: #{tpu_custom_call.1} parent=1 // pred_fallthru
      _
    // Predicated region
    $region18: #{tpu_custom_call.1} parent=1 // pred_check
      _
    $region19: #{tpu_custom_call.1} parent=1 // pred_check_branch
      %22 = sbr.rel (0) target = $region21
    $region20: #{tpu_custom_call.1} parent=1 // pred_region
      _
    $region21: #{tpu_custom_call.1} parent=1 // pred_fallthru
      _
    // Predicated region
    $region22: #{tpu_custom_call.1} parent=1 // pred_check
      _
    $region23: #{tpu_custom_call.1} parent=1 // pred_check_branch
      %24 = sbr.rel (0) target = $region25
    $region24: #{tpu_custom_call.1} parent=1 // pred_region
      _
    $region25: #{tpu_custom_call.1} parent=1 // pred_fallthru
      _
    // Predicated region
    $region26: #{tpu_custom_call.1} parent=1 // pred_check
      _
    $region27: #{tpu_custom_call.1} parent=1 // pred_check_branch
      %26 = sbr.rel (0) target = $region29
    $region28: #{tpu_custom_call.1} parent=1 // pred_region
      _
    $region29: #{tpu_custom_call.1} parent=1 // pred_fallthru
      _
    %v27 = vld [vmem:[%s0] sm:$0xff]
    %v28 = vld [vmem:[%s0 + $0x8] sm:$0xff]
    %v29 = vld [vmem:[%s0 + $0x10] sm:$0xff]
    %v30 = vld [vmem:[%s0 + $0x18] sm:$0xff]
    %v31 = vld [vmem:[%s0 + $0x20] sm:$0xff]
    %v32 = vld [vmem:[%s0 + $0x28] sm:$0xff]
    %v33 = vld [vmem:[%s1] sm:$0xff]
    %v34 = vld [vmem:[%s1 + $0x8] sm:$0xff]
    %v35 = vld [vmem:[%s1 + $0x10] sm:$0xff]
    %v36 = vld [vmem:[%s1 + $0x18] sm:$0xff]
    %v37 = vld [vmem:[%s2] sm:$0xff]
    %v38 = vld [vmem:[%s2 + $0x8] sm:$0xff]
    %v39 = vld [vmem:[%s2 + $0x10] sm:$0xff]
    %v40 = vld [vmem:[%s2 + $0x18] sm:$0xff]
    %42 = vset.pattern.permute.xlu0 0
    %43 = vperm.xlu0 %42, %v37
    %v44 = vpop.permute.xlu0 %43
    %47 = vset.pattern.permute.xlu0 0
    %48 = vperm.xlu0 %47, %v38
    %v49 = vpop.permute.xlu0 %48
    %52 = vset.pattern.permute.xlu0 0
    %53 = vperm.xlu0 %52, %v39
    %v54 = vpop.permute.xlu0 %53
    %57 = vset.pattern.permute.xlu0 0
    %58 = vperm.xlu0 %57, %v40
    %v59 = vpop.permute.xlu0 %58
    %vm61 = vcmask 130048
    %v63 = vsel %vm61, %v33, 0
    %v66 = vsel %vm61, %v34, 0
    %v69 = vsel %vm61, %v35, 0
    %v72 = vsel %vm61, %v36, 0
    %74 = vmatprep.subr.mxu0 %v28
    %75 = vmatpush1.msra.mxu0 %v27
    %76 = vmatprep.subr.mxu0 %v31
    %77 = vmatpush1.msra.mxu0 %v30
    %78 = vmatprep.subr.mxu0 0.0
    %79 = vmatpush1.msra.mxu0 0.0
    %80 = vmatprep.subr.mxu0 0.0
    %81 = vmatpush1.msra.mxu0 0.0
    %82 = vmatprep.subr.mxu0 0.0
    %83 = vmatpush1.msra.mxu0 0.0
    %84 = vmatprep.subr.mxu0 0.0
    %85 = vmatpush1.msra.mxu0 0.0
    %86 = vmatprep.subr.mxu0 0.0
    %87 = vmatpush1.msra.mxu0 0.0
    %88 = vmatprep.subr.mxu0 0.0
    %89 = vmatpush1.msra.mxu0 0.0
    %90 = vmatprep.subr.mxu0 0.0
    %91 = vmatpush1.msra.mxu0 0.0
    %92 = vmatprep.subr.mxu0 0.0
    %93 = vmatpush1.msra.mxu0 0.0
    %94 = vmatprep.subr.mxu0 0.0
    %95 = vmatpush1.msra.mxu0 0.0
    %96 = vmatprep.subr.mxu0 0.0
    %97 = vmatpush1.msra.mxu0 0.0
    %98 = vmatprep.subr.mxu0 0.0
    %99 = vmatpush1.msra.mxu0 0.0
    %100 = vmatprep.subr.mxu0 0.0
    %101 = vmatpush1.msra.mxu0 0.0
    %102 = vmatprep.subr.mxu0 0.0
    %103 = vmatpush1.msra.mxu0 0.0
    %104 = vmatprep.subr.mxu0 0.0
    %105 = vmatpush1.msra.mxu0 0.0
    %106 = vmatprep.subr.mxu0 0.0
    %107 = vmatpush1.msra.mxu0 0.0
    %108 = vmatprep.subr.mxu0 0.0
    %109 = vmatpush1.msra.mxu0 0.0
    %110 = vmatprep.subr.mxu0 0.0
    %111 = vmatpush1.msra.mxu0 0.0
    %112 = vmatprep.subr.mxu0 0.0
    %113 = vmatpush1.msra.mxu0 0.0
    %114 = vmatprep.subr.mxu0 0.0
    %115 = vmatpush1.msra.mxu0 0.0
    %116 = vmatprep.subr.mxu0 0.0
    %117 = vmatpush1.msra.mxu0 0.0
    %118 = vmatprep.subr.mxu0 0.0
    %119 = vmatpush1.msra.mxu0 0.0
    %120 = vmatprep.subr.mxu0 0.0
    %121 = vmatpush1.msra.mxu0 0.0
    %122 = vmatprep.subr.mxu0 0.0
    %123 = vmatpush1.msra.mxu0 0.0
    %124 = vmatprep.subr.mxu0 0.0
    %125 = vmatpush1.msra.mxu0 0.0
    %126 = vmatprep.subr.mxu0 0.0
    %127 = vmatpush1.msra.mxu0 0.0
    %128 = vmatprep.subr.mxu0 0.0
    %129 = vmatpush1.msra.mxu0 0.0
    %130 = vmatprep.subr.mxu0 0.0
    %131 = vmatpush1.msra.mxu0 0.0
    %132 = vmatprep.subr.mxu0 0.0
    %133 = vmatpush1.msra.mxu0 0.0
    %134 = vmatprep.subr.mxu0 0.0
    %135 = vmatpush1.msra.mxu0 0.0
    %136 = vmatprep.subr.mxu0 0.0
    %137 = vmatpush1.msra.mxu0 0.0
    %138 = vmatprep.mubr.f32.mxu0 0.0
    %139 = vmatmul.mubr.f32.gmra.mrb[0].mxu0 %v63
    %v140 = vpop.f32.mrb[0].mxu0
    %v141 = vadd.f32 %v44, %v140
    %v142 = vpop.f32.mrb[0].mxu0
    %v143 = vadd.f32 %v44, %v142
    %144 = vmatprep.mubr.f32.mxu0 0.0
    %145 = vmatmul.mubr.f32.gmra.mrb[0].mxu0 %v66
    %v146 = vpop.f32.mrb[0].mxu0
    %v147 = vadd.f32 %v49, %v146
    %v148 = vpop.f32.mrb[0].mxu0
    %v149 = vadd.f32 %v49, %v148
    %150 = vmatprep.mubr.f32.mxu0 0.0
    %151 = vmatmul.mubr.f32.gmra.mrb[0].mxu0 %v69
    %v152 = vpop.f32.mrb[0].mxu0
    %v153 = vadd.f32 %v54, %v152
    %v154 = vpop.f32.mrb[0].mxu0
    %v155 = vadd.f32 %v54, %v154
    %156 = vmatprep.mubr.f32.mxu0 0.0
    %157 = vmatmul.mubr.f32.gmra.mrb[0].mxu0 %v72
    %v158 = vpop.f32.mrb[0].mxu0
    %v159 = vadd.f32 %v59, %v158
    %v160 = vpop.f32.mrb[0].mxu0
    %v161 = vadd.f32 %v59, %v160
    %162 = vdwg.mxu0
    %163 = vmatprep.subr.mxu0 0.0
    %164 = vmatpush1.msra.mxu0 %v29
    %165 = vmatprep.subr.mxu0 0.0
    %166 = vmatpush1.msra.mxu0 %v32
    %167 = vmatprep.subr.mxu0 0.0
    %168 = vmatpush1.msra.mxu0 0.0
    %169 = vmatprep.subr.mxu0 0.0
    %170 = vmatpush1.msra.mxu0 0.0
    %171 = vmatprep.subr.mxu0 0.0
    %172 = vmatpush1.msra.mxu0 0.0
    %173 = vmatprep.subr.mxu0 0.0
    %174 = vmatpush1.msra.mxu0 0.0
    %175 = vmatprep.subr.mxu0 0.0
    %176 = vmatpush1.msra.mxu0 0.0
    %177 = vmatprep.subr.mxu0 0.0
    %178 = vmatpush1.msra.mxu0 0.0
    %179 = vmatprep.subr.mxu0 0.0
    %180 = vmatpush1.msra.mxu0 0.0
    %181 = vmatprep.subr.mxu0 0.0
    %182 = vmatpush1.msra.mxu0 0.0
    %183 = vmatprep.subr.mxu0 0.0
    %184 = vmatpush1.msra.mxu0 0.0
    %185 = vmatprep.subr.mxu0 0.0
    %186 = vmatpush1.msra.mxu0 0.0
    %187 = vmatprep.subr.mxu0 0.0
    %188 = vmatpush1.msra.mxu0 0.0
    %189 = vmatprep.subr.mxu0 0.0
    %190 = vmatpush1.msra.mxu0 0.0
    %191 = vmatprep.subr.mxu0 0.0
    %192 = vmatpush1.msra.mxu0 0.0
    %193 = vmatprep.subr.mxu0 0.0
    %194 = vmatpush1.msra.mxu0 0.0
    %195 = vmatprep.subr.mxu0 0.0
    %196 = vmatpush1.msra.mxu0 0.0
    %197 = vmatprep.subr.mxu0 0.0
    %198 = vmatpush1.msra.mxu0 0.0
    %199 = vmatprep.subr.mxu0 0.0
    %200 = vmatpush1.msra.mxu0 0.0
    %201 = vmatprep.subr.mxu0 0.0
    %202 = vmatpush1.msra.mxu0 0.0
    %203 = vmatprep.subr.mxu0 0.0
    %204 = vmatpush1.msra.mxu0 0.0
    %205 = vmatprep.subr.mxu0 0.0
    %206 = vmatpush1.msra.mxu0 0.0
    %207 = vmatprep.subr.mxu0 0.0
    %208 = vmatpush1.msra.mxu0 0.0
    %209 = vmatprep.subr.mxu0 0.0
    %210 = vmatpush1.msra.mxu0 0.0
    %211 = vmatprep.subr.mxu0 0.0
    %212 = vmatpush1.msra.mxu0 0.0
    %213 = vmatprep.subr.mxu0 0.0
    %214 = vmatpush1.msra.mxu0 0.0
    %215 = vmatprep.subr.mxu0 0.0
    %216 = vmatpush1.msra.mxu0 0.0
    %217 = vmatprep.subr.mxu0 0.0
    %218 = vmatpush1.msra.mxu0 0.0
    %219 = vmatprep.subr.mxu0 0.0
    %220 = vmatpush1.msra.mxu0 0.0
    %221 = vmatprep.subr.mxu0 0.0
    %222 = vmatpush1.msra.mxu0 0.0
    %223 = vmatprep.subr.mxu0 0.0
    %224 = vmatpush1.msra.mxu0 0.0
    %225 = vmatprep.subr.mxu0 0.0
    %226 = vmatpush1.msra.mxu0 0.0
    %227 = vmatprep.mubr.f32.mxu0 0.0
    %228 = vmatmul.mubr.f32.gmra.mrb[0].mxu0 %v63
    %v229 = vpop.f32.mrb[0].mxu0
    %v230 = vadd.f32 %v44, %v229
    %v231 = vpop.f32.mrb[0].mxu0
    %232 = vmatprep.mubr.f32.mxu0 0.0
    %233 = vmatmul.mubr.f32.gmra.mrb[0].mxu0 %v66
    %v234 = vpop.f32.mrb[0].mxu0
    %v235 = vadd.f32 %v49, %v234
    %v236 = vpop.f32.mrb[0].mxu0
    %237 = vmatprep.mubr.f32.mxu0 0.0
    %238 = vmatmul.mubr.f32.gmra.mrb[0].mxu0 %v69
    %v239 = vpop.f32.mrb[0].mxu0
    %v240 = vadd.f32 %v54, %v239
    %v241 = vpop.f32.mrb[0].mxu0
    %242 = vmatprep.mubr.f32.mxu0 0.0
    %243 = vmatmul.mubr.f32.gmra.mrb[0].mxu0 %v72
    %v244 = vpop.f32.mrb[0].mxu0
    %v245 = vadd.f32 %v59, %v244
    %v246 = vpop.f32.mrb[0].mxu0
    %247 = vdwg.mxu0
    %v248 = vmax.f32 %v141, 0.0
    %v249 = vmax.f32 %v143, 0.0
    %v250 = vmax.f32 %v230, 0.0
    %v251 = vmax.f32 %v147, 0.0
    %v252 = vmax.f32 %v149, 0.0
    %v253 = vmax.f32 %v235, 0.0
    %v254 = vmax.f32 %v153, 0.0
    %v255 = vmax.f32 %v155, 0.0
    %v256 = vmax.f32 %v240, 0.0
    %v257 = vmax.f32 %v159, 0.0
    %v258 = vmax.f32 %v161, 0.0
    %v259 = vmax.f32 %v245, 0.0
    %v260 = vld [vmem:[%s3] sm:$0xff]
    %v261 = vld [vmem:[%s3 + $0x8] sm:$0xff]
    %v262 = vld [vmem:[%s3 + $0x10] sm:$0xff]
    %v263 = vld [vmem:[%s3 + $0x18] sm:$0xff]
    %v264 = vld [vmem:[%s4] sm:$0xff]
    %v265 = vld [vmem:[%s4 + $0x8] sm:$0xff]
    %v266 = vld [vmem:[%s4 + $0x10] sm:$0xff]
    %v267 = vld [vmem:[%s4 + $0x18] sm:$0xff]
    %269 = vset.pattern.permute.xlu0 0
    %270 = vperm.xlu0 %269, %v264
    %v271 = vpop.permute.xlu0 %270
    %274 = vset.pattern.permute.xlu0 0
    %275 = vperm.xlu0 %274, %v265
    %v276 = vpop.permute.xlu0 %275
    %279 = vset.pattern.permute.xlu0 0
    %280 = vperm.xlu0 %279, %v266
    %v281 = vpop.permute.xlu0 %280
    %284 = vset.pattern.permute.xlu0 0
    %285 = vperm.xlu0 %284, %v267
    %v286 = vpop.permute.xlu0 %285
    %vm288 = vcmask 261120
    %v290 = vsel %vm288, %v260, 0
    %v293 = vsel %vm288, %v261, 0
    %v296 = vsel %vm288, %v262, 0
    %v299 = vsel %vm288, %v263, 0
    %301 = vmatprep.subr.mxu0 %v249
    %302 = vmatpush1.msra.mxu0 %v248
    %303 = vmatprep.subr.mxu0 %v252
    %304 = vmatpush1.msra.mxu0 %v251
    %305 = vmatprep.subr.mxu0 %v255
    %306 = vmatpush1.msra.mxu0 %v254
    %307 = vmatprep.subr.mxu0 %v258
    %308 = vmatpush1.msra.mxu0 %v257
    %309 = vmatprep.subr.mxu0 0.0
    %310 = vmatpush1.msra.mxu0 0.0
    %311 = vmatprep.subr.mxu0 0.0
    %312 = vmatpush1.msra.mxu0 0.0
    %313 = vmatprep.subr.mxu0 0.0
    %314 = vmatpush1.msra.mxu0 0.0
    %315 = vmatprep.subr.mxu0 0.0
    %316 = vmatpush1.msra.mxu0 0.0
    %317 = vmatprep.subr.mxu0 0.0
    %318 = vmatpush1.msra.mxu0 0.0
    %319 = vmatprep.subr.mxu0 0.0
    %320 = vmatpush1.msra.mxu0 0.0
    %321 = vmatprep.subr.mxu0 0.0
    %322 = vmatpush1.msra.mxu0 0.0
    %323 = vmatprep.subr.mxu0 0.0
    %324 = vmatpush1.msra.mxu0 0.0
    %325 = vmatprep.subr.mxu0 0.0
    %326 = vmatpush1.msra.mxu0 0.0
    %327 = vmatprep.subr.mxu0 0.0
    %328 = vmatpush1.msra.mxu0 0.0
    %329 = vmatprep.subr.mxu0 0.0
    %330 = vmatpush1.msra.mxu0 0.0
    %331 = vmatprep.subr.mxu0 0.0
    %332 = vmatpush1.msra.mxu0 0.0
    %333 = vmatprep.subr.mxu0 0.0
    %334 = vmatpush1.msra.mxu0 0.0
    %335 = vmatprep.subr.mxu0 0.0
    %336 = vmatpush1.msra.mxu0 0.0
    %337 = vmatprep.subr.mxu0 0.0
    %338 = vmatpush1.msra.mxu0 0.0
    %339 = vmatprep.subr.mxu0 0.0
    %340 = vmatpush1.msra.mxu0 0.0
    %341 = vmatprep.subr.mxu0 0.0
    %342 = vmatpush1.msra.mxu0 0.0
    %343 = vmatprep.subr.mxu0 0.0
    %344 = vmatpush1.msra.mxu0 0.0
    %345 = vmatprep.subr.mxu0 0.0
    %346 = vmatpush1.msra.mxu0 0.0
    %347 = vmatprep.subr.mxu0 0.0
    %348 = vmatpush1.msra.mxu0 0.0
    %349 = vmatprep.subr.mxu0 0.0
    %350 = vmatpush1.msra.mxu0 0.0
    %351 = vmatprep.subr.mxu0 0.0
    %352 = vmatpush1.msra.mxu0 0.0
    %353 = vmatprep.subr.mxu0 0.0
    %354 = vmatpush1.msra.mxu0 0.0
    %355 = vmatprep.subr.mxu0 0.0
    %356 = vmatpush1.msra.mxu0 0.0
    %357 = vmatprep.subr.mxu0 0.0
    %358 = vmatpush1.msra.mxu0 0.0
    %359 = vmatprep.subr.mxu0 0.0
    %360 = vmatpush1.msra.mxu0 0.0
    %361 = vmatprep.subr.mxu0 0.0
    %362 = vmatpush1.msra.mxu0 0.0
    %363 = vmatprep.subr.mxu0 0.0
    %364 = vmatpush1.msra.mxu0 0.0
    %365 = vmatprep.mubr.f32.mxu0 0.0
    %366 = vmatmul.mubr.f32.gmra.mrb[0].mxu0 %v290
    %v367 = vpop.f32.mrb[0].mxu0
    %v368 = vadd.f32 %v271, %v367
    %v369 = vpop.f32.mrb[0].mxu0
    %v370 = vadd.f32 %v271, %v369
    %371 = vmatprep.mubr.f32.mxu0 0.0
    %372 = vmatmul.mubr.f32.gmra.mrb[0].mxu0 %v293
    %v373 = vpop.f32.mrb[0].mxu0
    %v374 = vadd.f32 %v276, %v373
    %v375 = vpop.f32.mrb[0].mxu0
    %v376 = vadd.f32 %v276, %v375
    %377 = vmatprep.mubr.f32.mxu0 0.0
    %378 = vmatmul.mubr.f32.gmra.mrb[0].mxu0 %v296
    %v379 = vpop.f32.mrb[0].mxu0
    %v380 = vadd.f32 %v281, %v379
    %v381 = vpop.f32.mrb[0].mxu0
    %v382 = vadd.f32 %v281, %v381
    %383 = vmatprep.mubr.f32.mxu0 0.0
    %384 = vmatmul.mubr.f32.gmra.mrb[0].mxu0 %v299
    %v385 = vpop.f32.mrb[0].mxu0
    %v386 = vadd.f32 %v286, %v385
    %v387 = vpop.f32.mrb[0].mxu0
    %v388 = vadd.f32 %v286, %v387
    %389 = vdwg.mxu0
    %390 = vmatprep.subr.mxu0 0.0
    %391 = vmatpush1.msra.mxu0 %v250
    %392 = vmatprep.subr.mxu0 0.0
    %393 = vmatpush1.msra.mxu0 %v253
    %394 = vmatprep.subr.mxu0 0.0
    %395 = vmatpush1.msra.mxu0 %v256
    %396 = vmatprep.subr.mxu0 0.0
    %397 = vmatpush1.msra.mxu0 %v259
    %398 = vmatprep.subr.mxu0 0.0
    %399 = vmatpush1.msra.mxu0 0.0
    %400 = vmatprep.subr.mxu0 0.0
    %401 = vmatpush1.msra.mxu0 0.0
    %402 = vmatprep.subr.mxu0 0.0
    %403 = vmatpush1.msra.mxu0 0.0
    %404 = vmatprep.subr.mxu0 0.0
    %405 = vmatpush1.msra.mxu0 0.0
    %406 = vmatprep.subr.mxu0 0.0
    %407 = vmatpush1.msra.mxu0 0.0
    %408 = vmatprep.subr.mxu0 0.0
    %409 = vmatpush1.msra.mxu0 0.0
    %410 = vmatprep.subr.mxu0 0.0
    %411 = vmatpush1.msra.mxu0 0.0
    %412 = vmatprep.subr.mxu0 0.0
    %413 = vmatpush1.msra.mxu0 0.0
    %414 = vmatprep.subr.mxu0 0.0
    %415 = vmatpush1.msra.mxu0 0.0
    %416 = vmatprep.subr.mxu0 0.0
    %417 = vmatpush1.msra.mxu0 0.0
    %418 = vmatprep.subr.mxu0 0.0
    %419 = vmatpush1.msra.mxu0 0.0
    %420 = vmatprep.subr.mxu0 0.0
    %421 = vmatpush1.msra.mxu0 0.0
    %422 = vmatprep.subr.mxu0 0.0
    %423 = vmatpush1.msra.mxu0 0.0
    %424 = vmatprep.subr.mxu0 0.0
    %425 = vmatpush1.msra.mxu0 0.0
    %426 = vmatprep.subr.mxu0 0.0
    %427 = vmatpush1.msra.mxu0 0.0
    %428 = vmatprep.subr.mxu0 0.0
    %429 = vmatpush1.msra.mxu0 0.0
    %430 = vmatprep.subr.mxu0 0.0
    %431 = vmatpush1.msra.mxu0 0.0
    %432 = vmatprep.subr.mxu0 0.0
    %433 = vmatpush1.msra.mxu0 0.0
    %434 = vmatprep.subr.mxu0 0.0
    %435 = vmatpush1.msra.mxu0 0.0
    %436 = vmatprep.subr.mxu0 0.0
    %437 = vmatpush1.msra.mxu0 0.0
    %438 = vmatprep.subr.mxu0 0.0
    %439 = vmatpush1.msra.mxu0 0.0
    %440 = vmatprep.subr.mxu0 0.0
    %441 = vmatpush1.msra.mxu0 0.0
    %442 = vmatprep.subr.mxu0 0.0
    %443 = vmatpush1.msra.mxu0 0.0
    %444 = vmatprep.subr.mxu0 0.0
    %445 = vmatpush1.msra.mxu0 0.0
    %446 = vmatprep.subr.mxu0 0.0
    %447 = vmatpush1.msra.mxu0 0.0
    %448 = vmatprep.subr.mxu0 0.0
    %449 = vmatpush1.msra.mxu0 0.0
    %450 = vmatprep.subr.mxu0 0.0
    %451 = vmatpush1.msra.mxu0 0.0
    %452 = vmatprep.subr.mxu0 0.0
    %453 = vmatpush1.msra.mxu0 0.0
    %454 = vmatprep.mubr.f32.mxu0 0.0
    %455 = vmatmul.mubr.f32.gmra.mrb[0].mxu0 %v290
    %v456 = vpop.f32.mrb[0].mxu0
    %v457 = vadd.f32 %v271, %v456
    %v458 = vpop.f32.mrb[0].mxu0
    %459 = vmatprep.mubr.f32.mxu0 0.0
    %460 = vmatmul.mubr.f32.gmra.mrb[0].mxu0 %v293
    %v461 = vpop.f32.mrb[0].mxu0
    %v462 = vadd.f32 %v276, %v461
    %v463 = vpop.f32.mrb[0].mxu0
    %464 = vmatprep.mubr.f32.mxu0 0.0
    %465 = vmatmul.mubr.f32.gmra.mrb[0].mxu0 %v296
    %v466 = vpop.f32.mrb[0].mxu0
    %v467 = vadd.f32 %v281, %v466
    %v468 = vpop.f32.mrb[0].mxu0
    %469 = vmatprep.mubr.f32.mxu0 0.0
    %470 = vmatmul.mubr.f32.gmra.mrb[0].mxu0 %v299
    %v471 = vpop.f32.mrb[0].mxu0
    %v472 = vadd.f32 %v286, %v471
    %v473 = vpop.f32.mrb[0].mxu0
    %474 = vdwg.mxu0
    %v475 = vmax.f32 %v368, 0.0
    %v476 = vmax.f32 %v370, 0.0
    %v477 = vmax.f32 %v457, 0.0
    %v478 = vmax.f32 %v374, 0.0
    %v479 = vmax.f32 %v376, 0.0
    %v480 = vmax.f32 %v462, 0.0
    %v481 = vmax.f32 %v380, 0.0
    %v482 = vmax.f32 %v382, 0.0
    %v483 = vmax.f32 %v467, 0.0
    %v484 = vmax.f32 %v386, 0.0
    %v485 = vmax.f32 %v388, 0.0
    %v486 = vmax.f32 %v472, 0.0
    %v487 = vld [vmem:[%s5] sm:$0xff]
    %v488 = vld [vmem:[%s6] sm:$0xff]
    %490 = vset.pattern.permute.xlu0 0
    %491 = vperm.xlu0 %490, %v488
    %v492 = vpop.permute.xlu0 %491
    %v495 = vsel %vm288, %v487, 0
    %497 = vmatprep.subr.mxu0 %v476
    %498 = vmatpush1.msra.mxu0 %v475
    %499 = vmatprep.subr.mxu0 %v479
    %500 = vmatpush1.msra.mxu0 %v478
    %501 = vmatprep.subr.mxu0 %v482
    %502 = vmatpush1.msra.mxu0 %v481
    %503 = vmatprep.subr.mxu0 %v485
    %504 = vmatpush1.msra.mxu0 %v484
    %505 = vmatprep.subr.mxu0 0.0
    %506 = vmatpush1.msra.mxu0 0.0
    %507 = vmatprep.subr.mxu0 0.0
    %508 = vmatpush1.msra.mxu0 0.0
    %509 = vmatprep.subr.mxu0 0.0
    %510 = vmatpush1.msra.mxu0 0.0
    %511 = vmatprep.subr.mxu0 0.0
    %512 = vmatpush1.msra.mxu0 0.0
    %513 = vmatprep.subr.mxu0 0.0
    %514 = vmatpush1.msra.mxu0 0.0
    %515 = vmatprep.subr.mxu0 0.0
    %516 = vmatpush1.msra.mxu0 0.0
    %517 = vmatprep.subr.mxu0 0.0
    %518 = vmatpush1.msra.mxu0 0.0
    %519 = vmatprep.subr.mxu0 0.0
    %520 = vmatpush1.msra.mxu0 0.0
    %521 = vmatprep.subr.mxu0 0.0
    %522 = vmatpush1.msra.mxu0 0.0
    %523 = vmatprep.subr.mxu0 0.0
    %524 = vmatpush1.msra.mxu0 0.0
    %525 = vmatprep.subr.mxu0 0.0
    %526 = vmatpush1.msra.mxu0 0.0
    %527 = vmatprep.subr.mxu0 0.0
    %528 = vmatpush1.msra.mxu0 0.0
    %529 = vmatprep.subr.mxu0 0.0
    %530 = vmatpush1.msra.mxu0 0.0
    %531 = vmatprep.subr.mxu0 0.0
    %532 = vmatpush1.msra.mxu0 0.0
    %533 = vmatprep.subr.mxu0 0.0
    %534 = vmatpush1.msra.mxu0 0.0
    %535 = vmatprep.subr.mxu0 0.0
    %536 = vmatpush1.msra.mxu0 0.0
    %537 = vmatprep.subr.mxu0 0.0
    %538 = vmatpush1.msra.mxu0 0.0
    %539 = vmatprep.subr.mxu0 0.0
    %540 = vmatpush1.msra.mxu0 0.0
    %541 = vmatprep.subr.mxu0 0.0
    %542 = vmatpush1.msra.mxu0 0.0
    %543 = vmatprep.subr.mxu0 0.0
    %544 = vmatpush1.msra.mxu0 0.0
    %545 = vmatprep.subr.mxu0 0.0
    %546 = vmatpush1.msra.mxu0 0.0
    %547 = vmatprep.subr.mxu0 0.0
    %548 = vmatpush1.msra.mxu0 0.0
    %549 = vmatprep.subr.mxu0 0.0
    %550 = vmatpush1.msra.mxu0 0.0
    %551 = vmatprep.subr.mxu0 0.0
    %552 = vmatpush1.msra.mxu0 0.0
    %553 = vmatprep.subr.mxu0 0.0
    %554 = vmatpush1.msra.mxu0 0.0
    %555 = vmatprep.subr.mxu0 0.0
    %556 = vmatpush1.msra.mxu0 0.0
    %557 = vmatprep.subr.mxu0 0.0
    %558 = vmatpush1.msra.mxu0 0.0
    %559 = vmatprep.subr.mxu0 0.0
    %560 = vmatpush1.msra.mxu0 0.0
    %561 = vmatprep.mubr.f32.mxu0 0.0
    %562 = vmatmul.mubr.f32.gmra.mrb[0].mxu0 %v495
    %v563 = vpop.f32.mrb[0].mxu0
    %v564 = vadd.f32 %v492, %v563
    %v565 = vpop.f32.mrb[0].mxu0
    %v566 = vadd.f32 %v492, %v565
    %567 = vdwg.mxu0
    %568 = vmatprep.subr.mxu0 0.0
    %569 = vmatpush1.msra.mxu0 %v477
    %570 = vmatprep.subr.mxu0 0.0
    %571 = vmatpush1.msra.mxu0 %v480
    %572 = vmatprep.subr.mxu0 0.0
    %573 = vmatpush1.msra.mxu0 %v483
    %574 = vmatprep.subr.mxu0 0.0
    %575 = vmatpush1.msra.mxu0 %v486
    %576 = vmatprep.subr.mxu0 0.0
    %577 = vmatpush1.msra.mxu0 0.0
    %578 = vmatprep.subr.mxu0 0.0
    %579 = vmatpush1.msra.mxu0 0.0
    %580 = vmatprep.subr.mxu0 0.0
    %581 = vmatpush1.msra.mxu0 0.0
    %582 = vmatprep.subr.mxu0 0.0
    %583 = vmatpush1.msra.mxu0 0.0
    %584 = vmatprep.subr.mxu0 0.0
    %585 = vmatpush1.msra.mxu0 0.0
    %586 = vmatprep.subr.mxu0 0.0
    %587 = vmatpush1.msra.mxu0 0.0
    %588 = vmatprep.subr.mxu0 0.0
    %589 = vmatpush1.msra.mxu0 0.0
    %590 = vmatprep.subr.mxu0 0.0
    %591 = vmatpush1.msra.mxu0 0.0
    %592 = vmatprep.subr.mxu0 0.0
    %593 = vmatpush1.msra.mxu0 0.0
    %594 = vmatprep.subr.mxu0 0.0
    %595 = vmatpush1.msra.mxu0 0.0
    %596 = vmatprep.subr.mxu0 0.0
    %597 = vmatpush1.msra.mxu0 0.0
    %598 = vmatprep.subr.mxu0 0.0
    %599 = vmatpush1.msra.mxu0 0.0
    %600 = vmatprep.subr.mxu0 0.0
    %601 = vmatpush1.msra.mxu0 0.0
    %602 = vmatprep.subr.mxu0 0.0
    %603 = vmatpush1.msra.mxu0 0.0
    %604 = vmatprep.subr.mxu0 0.0
    %605 = vmatpush1.msra.mxu0 0.0
    %606 = vmatprep.subr.mxu0 0.0
    %607 = vmatpush1.msra.mxu0 0.0
    %608 = vmatprep.subr.mxu0 0.0
    %609 = vmatpush1.msra.mxu0 0.0
    %610 = vmatprep.subr.mxu0 0.0
    %611 = vmatpush1.msra.mxu0 0.0
    %612 = vmatprep.subr.mxu0 0.0
    %613 = vmatpush1.msra.mxu0 0.0
    %614 = vmatprep.subr.mxu0 0.0
    %615 = vmatpush1.msra.mxu0 0.0
    %616 = vmatprep.subr.mxu0 0.0
    %617 = vmatpush1.msra.mxu0 0.0
    %618 = vmatprep.subr.mxu0 0.0
    %619 = vmatpush1.msra.mxu0 0.0
    %620 = vmatprep.subr.mxu0 0.0
    %621 = vmatpush1.msra.mxu0 0.0
    %622 = vmatprep.subr.mxu0 0.0
    %623 = vmatpush1.msra.mxu0 0.0
    %624 = vmatprep.subr.mxu0 0.0
    %625 = vmatpush1.msra.mxu0 0.0
    %626 = vmatprep.subr.mxu0 0.0
    %627 = vmatpush1.msra.mxu0 0.0
    %628 = vmatprep.subr.mxu0 0.0
    %629 = vmatpush1.msra.mxu0 0.0
    %630 = vmatprep.subr.mxu0 0.0
    %631 = vmatpush1.msra.mxu0 0.0
    %632 = vmatprep.mubr.f32.mxu0 0.0
    %633 = vmatmul.mubr.f32.gmra.mrb[0].mxu0 %v495
    %v634 = vpop.f32.mrb[0].mxu0
    %v635 = vadd.f32 %v492, %v634
    %v636 = vpop.f32.mrb[0].mxu0
    %637 = vdwg.mxu0
    %638 = vst [vmem:[#allocation2] sm:$0xff] %v564
    %639 = vst [vmem:[#allocation2 + $0x8] sm:$0xff] %v566
    %640 = vst [vmem:[#allocation2 + $0x10] sm:$0xff] %v635
    // Predicated region
    $region30: #{tpu_custom_call.1} parent=1 // pred_check
      _
    $region31: #{tpu_custom_call.1} parent=1 // pred_check_branch
      %642 = sbr.rel (0) target = $region33
    $region32: #{tpu_custom_call.1} parent=1 // pred_region
      %s644 = ssub.s32 384, 384
      %645 = vsyncadd [#allocation3], %s644
      %s647 = sshll.u32 [#allocation2], 4
      %s648 = int_to_ptr.vmem [resolvable:$true] %s647
      %650 = dma.vmem_to_hbm [thread:$0]  %s648, 384, %s7, [#allocation3]
    $region33: #{tpu_custom_call.1} parent=1 // pred_fallthru
      _
    // Predicated region
    $region34: #{tpu_custom_call.1} parent=1 // pred_check
      _
    $region35: #{tpu_custom_call.1} parent=1 // pred_check_branch
      %652 = sbr.rel (0) target = $region37
    $region36: #{tpu_custom_call.1} parent=1 // pred_region
      %653 = dma.done [#allocation3], 384
    $region37: #{tpu_custom_call.1} parent=1 // pred_fallthru
      _
    %654 = vsyncpa [#allocation3], 1

</llo_original>
